<compile_context>
chip_gen: v7x
topology: tpu7x:2x2x1
jax: 0.10.0
libtpu: 0.0.40
codegen_flags: <defaults>
</compile_context>

<pallas_src>
import functools

import jax
import jax.numpy as jnp
from jax.experimental import pallas as pl
from jax.experimental.pallas import tpu as pltpu

BN_EPS = 1e-5


def _round_up(a, b):
    return (a + b - 1) // b * b


def _conv_stats_kernel(xm_ref, xh_ref, w_ref, y_ref, stats_ref, *,
                       K, tile_l, l_rem):
    """One (sample, L-tile) step: conv via K shifted matmuls + BN partial stats."""
    # xm: (Cin_p, tile_l) bf16 main tile; xh: (Cin_p, 128) bf16 halo.
    xw = jnp.concatenate([xm_ref[...], xh_ref[...]], axis=1)  # (Cin_p, tile_l+128)

    acc = jnp.dot(w_ref[0], xw[:, 0:tile_l],
                  preferred_element_type=jnp.float32)
    for k in range(1, K):                      # K unrolled small-tap matmuls
        acc = acc + jnp.dot(w_ref[k], xw[:, k:k + tile_l],
                            preferred_element_type=jnp.float32)
    # No bias add: it cancels exactly under train-mode BatchNorm.
    y_ref[...] = acc.astype(y_ref.dtype)       # bf16 conv intermediate

    def _write_stats(a):
        stats_ref[...] = jnp.concatenate(
            [jnp.sum(a, axis=1, keepdims=True),
             jnp.sum(a * a, axis=1, keepdims=True)], axis=1)

    if l_rem == 0:
        # Every column of every tile is a valid output column: no mask at all.
        _write_stats(acc)
    else:
        j = pl.program_id(1)
        last = pl.num_programs(1) - 1

        @pl.when(j < last)
        def _():
            _write_stats(acc)

        @pl.when(j == last)                    # only the ragged tile pays for a mask
        def _():
            col = jax.lax.broadcasted_iota(jnp.int32, acc.shape, 1)
            _write_stats(jnp.where(col < l_rem, acc, 0.0))


def _bn_relu_kernel(y_ref, scale_ref, shift_ref, o_ref, *, Cout, L_out):
    # One FMA + ReLU per element; writes the final (Cout, L_out) slab directly.
    y = y_ref[...][:Cout, :L_out].astype(jnp.float32)
    s = scale_ref[...][:Cout]
    b = shift_ref[...][:Cout]
    o_ref[...] = jnp.maximum(y * s + b, 0.0)


@jax.jit
def basic_conv1d(x, weight, bias, gamma, beta):
    """x: (N, Cin, L) f32; weight: (Cout, Cin, K); bias/gamma/beta: (Cout,).

    Matches BasicConv1d.forward in training mode (batch statistics).  `bias`
    is accepted for API parity but is mathematically unused: a per-channel
    constant added before train-mode BatchNorm cancels exactly.
    """
    del bias
    N, Cin, L = x.shape
    Cout, _, K = weight.shape
    assert K <= 129, "halo block assumes K - 1 <= 128"
    L_out = L - K + 1                      # stride=1, padding=0, dilation=1
    assert L_out >= 1

    Cin_p = _round_up(Cin, 16)             # bf16 sublane packing (mod 16)
    Co_p = _round_up(Cout, 16)
    tile_l = min(2048, _round_up(L_out, 128))
    num_lt = pl.cdiv(L_out, tile_l)
    Lout_pad = num_lt * tile_l
    L_x = Lout_pad + 128                   # room for the 128-wide halo block
    l_rem = L_out % tile_l
    lt128 = tile_l // 128

    # Pad + bf16 cast of x in a single XLA pass (x is the smallest tensor).
    x_p = jnp.pad(x, ((0, 0), (0, Cin_p - Cin), (0, L_x - L))).astype(jnp.bfloat16)
    # (K, Co_p, Cin_p) weight taps, resident in VMEM across the whole grid.
    w_p = jnp.pad(jnp.transpose(weight, (2, 0, 1)),
                  ((0, 0), (0, Co_p - Cout), (0, Cin_p - Cin))).astype(jnp.bfloat16)

    conv_cost = pl.CostEstimate(
        flops=2 * N * num_lt * K * Co_p * Cin_p * tile_l,
        transcendentals=0,
        bytes_accessed=(N * Cin_p * L_x * 2          # input (main + small halo)
                        + K * Co_p * Cin_p * 2       # weights (resident)
                        + N * Co_p * Lout_pad * 2    # bf16 conv intermediate
                        + N * num_lt * Co_p * 2 * 4))

    # --- kernel 1: conv (K shifted matmuls) + per-tile BN partial stats ------
    y2, stats = pl.pallas_call(
        functools.partial(_conv_stats_kernel, K=K, tile_l=tile_l, l_rem=l_rem),
        out_shape=(
            jax.ShapeDtypeStruct((N, Co_p, Lout_pad), jnp.bfloat16),
            jax.ShapeDtypeStruct((N, num_lt, Co_p, 2), jnp.float32),
        ),
        grid_spec=pl.GridSpec(
            grid=(N, num_lt),
            in_specs=[
                pl.BlockSpec((None, Cin_p, tile_l), lambda n, j: (n, 0, j)),
                pl.BlockSpec((None, Cin_p, 128),
                             lambda n, j: (n, 0, (j + 1) * lt128)),
                pl.BlockSpec((K, Co_p, Cin_p), lambda n, j: (0, 0, 0)),
            ],
            out_specs=(
                pl.BlockSpec((None, Co_p, tile_l), lambda n, j: (n, 0, j)),
                pl.BlockSpec((None, None, Co_p, 2), lambda n, j: (n, j, 0, 0)),
            ),
        ),
        compiler_params=pltpu.CompilerParams(
            dimension_semantics=("parallel", "parallel"),
            vmem_limit_bytes=48 * 1024 * 1024),
        cost_estimate=conv_cost,
    )(x_p, x_p, w_p)

    # --- BatchNorm1d (training-mode batch stats) folded into scale/shift -----
    count = jnp.float32(N * L_out)
    s = jnp.sum(stats[..., 0], axis=(0, 1))          # (Co_p,)
    sq = jnp.sum(stats[..., 1], axis=(0, 1))         # (Co_p,)
    mean = s / count
    # TODO(synk): E[x^2]-E[x]^2 can cancel catastrophically when |mean|>>std;
    # switch to a shifted two-pass formulation if that regime matters.
    var = jnp.maximum(sq / count - mean * mean, 0.0)  # biased variance (PyTorch BN)
    inv = jax.lax.rsqrt(var + BN_EPS)
    gamma_p = jnp.pad(gamma.astype(jnp.float32), (0, Co_p - Cout))
    beta_p = jnp.pad(beta.astype(jnp.float32), (0, Co_p - Cout))
    scale = (gamma_p * inv).reshape(Co_p, 1)
    shift = (beta_p - mean * gamma_p * inv).reshape(Co_p, 1)

    # --- kernel 2: y*scale + shift, ReLU, final (N, Cout, L_out) layout ------
    # One sample per grid step; assumes a (Cout, L_out) slab fits in VMEM.
    out = pl.pallas_call(
        functools.partial(_bn_relu_kernel, Cout=Cout, L_out=L_out),
        out_shape=jax.ShapeDtypeStruct((N, Cout, L_out), jnp.float32),
        grid_spec=pl.GridSpec(
            grid=(N,),
            in_specs=[
                pl.BlockSpec((None, Co_p, Lout_pad), lambda n: (n, 0, 0)),
                pl.BlockSpec((Co_p, 1), lambda n: (0, 0)),
                pl.BlockSpec((Co_p, 1), lambda n: (0, 0)),
            ],
            out_specs=pl.BlockSpec((None, Cout, L_out), lambda n: (n, 0, 0)),
        ),
        compiler_params=pltpu.CompilerParams(
            dimension_semantics=("parallel",),
            vmem_limit_bytes=48 * 1024 * 1024),
    )(y2, scale, shift)

    return out


def reference(x, weight, bias, gamma, beta):
    """Plain-JAX reference matching PyTorch BasicConv1d.forward (train mode)."""
    y = jax.lax.conv_general_dilated(
        x, weight, window_strides=(1,), padding='VALID',
        dimension_numbers=('NCH', 'OIH', 'NCH'))
    y = y + bias[None, :, None]
    mean = jnp.mean(y, axis=(0, 2), keepdims=True)
    var = jnp.mean((y - mean) ** 2, axis=(0, 2), keepdims=True)
    y = (y - mean) * jax.lax.rsqrt(var + BN_EPS)
    y = y * gamma[None, :, None] + beta[None, :, None]
    return jnp.maximum(y, 0.0)


def _run_case(key, N, C_IN, C_OUT, L, K):
    kx, kw, kb, kg, kbe = jax.random.split(key, 5)
    x = jax.random.normal(kx, (N, C_IN, L), dtype=jnp.float32)
    weight = jax.random.normal(kw, (C_OUT, C_IN, K), dtype=jnp.float32) * 0.1
    bias = jax.random.normal(kb, (C_OUT,), dtype=jnp.float32) * 0.1
    gamma = 1.0 + 0.5 * jax.random.normal(kg, (C_OUT,), dtype=jnp.float32) * 0.2
    beta = jax.random.normal(kbe, (C_OUT,), dtype=jnp.float32) * 0.1

    out = jax.block_until_ready(basic_conv1d(x, weight, bias, gamma, beta))
    ref = reference(x, weight, bias, gamma, beta)
    assert out.shape == (N, C_OUT, L - K + 1)
    # bf16 matmul inputs / bf16 intermediate -> slightly looser tolerance.
    assert jnp.allclose(out, ref, atol=3e-2, rtol=3e-2)


if __name__ == "__main__":
    key = jax.random.PRNGKey(0)
    k1, k2 = jax.random.split(key)

    # Small deterministic case consistent with Conv1d(in=4, out=8, kernel=3).
    _run_case(k1, N=2, C_IN=4, C_OUT=8, L=16, K=3)
    # Second case exercising multiple L-tiles, the ragged-tile mask path and
    # channel counts that are not multiples of 16.
    _run_case(k2, N=2, C_IN=6, C_OUT=10, L=2116, K=5)

    print("KERNEL_OK")
</pallas_src>

<mosaic_0001>
module attributes {stable_mosaic.version = 11 : i64} {
  func.func @_conv_stats_kernel(%arg0: i32, %arg1: i32, %arg2: memref<1x16x128xbf16, #tpu.memory_space<vmem>>, %arg3: memref<1x16x128xbf16, #tpu.memory_space<vmem>>, %arg4: memref<3x16x16xbf16, #tpu.memory_space<vmem>>, %arg5: memref<1x16x128xbf16, #tpu.memory_space<vmem>>, %arg6: memref<1x1x16x2xf32, #tpu.memory_space<vmem>>) attributes {dimension_semantics = [#tpu.dimension_semantics<parallel>, #tpu.dimension_semantics<parallel>], iteration_bounds = array<i64: 2, 1>, scalar_prefetch = 0 : i64, scratch_operands = 0 : i64, tpu.core_type = #tpu.core_type<tc>, window_params = [{transform_indices = @transform_0, window_bounds = array<i64: 1, 16, 128>}, {transform_indices = @transform_1, window_bounds = array<i64: 1, 16, 128>}, {pipeline_mode = #tpu.pipeline_mode<synchronous>, transform_indices = @transform_2, window_bounds = array<i64: 3, 16, 16>}, {transform_indices = @transform_3, window_bounds = array<i64: 1, 16, 128>}, {transform_indices = @transform_4, window_bounds = array<i64: 1, 1, 16, 2>}]} {
    %c0 = arith.constant 0 : index
    %c0_0 = arith.constant 0 : index
    %c0_1 = arith.constant 0 : index
    %0 = vector.load %arg2[%c0, %c0_0, %c0_1] : memref<1x16x128xbf16, #tpu.memory_space<vmem>>, vector<1x16x128xbf16>
    %1 = vector.shape_cast %0 : vector<1x16x128xbf16> to vector<16x128xbf16>
    %c0_2 = arith.constant 0 : index
    %c0_3 = arith.constant 0 : index
    %c0_4 = arith.constant 0 : index
    %2 = vector.load %arg3[%c0_2, %c0_3, %c0_4] : memref<1x16x128xbf16, #tpu.memory_space<vmem>>, vector<1x16x128xbf16>
    %3 = vector.shape_cast %2 : vector<1x16x128xbf16> to vector<16x128xbf16>
    %4 = tpu.concatenate %1, %3 in 1 : vector<16x128xbf16>, vector<16x128xbf16> -> vector<16x256xbf16>
    %c0_5 = arith.constant 0 : index
    %c0_6 = arith.constant 0 : index
    %c0_7 = arith.constant 0 : index
    %5 = vector.load %arg4[%c0_5, %c0_6, %c0_7] : memref<3x16x16xbf16, #tpu.memory_space<vmem>>, vector<1x16x16xbf16>
    %6 = vector.shape_cast %5 : vector<1x16x16xbf16> to vector<16x16xbf16>
    %7 = vector.extract_strided_slice %4 {offsets = [0, 0], sizes = [16, 128], strides = [1, 1]} : vector<16x256xbf16> to vector<16x128xbf16>
    %cst = arith.constant dense<0.000000e+00> : vector<16x128xf32>
    %8 = tpu.matmul %6, %7, %cst {dimension_numbers = #tpu.dot_dimension_numbers<[1], [0], [0], [1], [0, 0, 1, 1], [], []>} : vector<16x16xbf16>, vector<16x128xbf16>, vector<16x128xf32> -> vector<16x128xf32>
    %c1 = arith.constant 1 : index
    %c0_8 = arith.constant 0 : index
    %c0_9 = arith.constant 0 : index
    %9 = vector.load %arg4[%c1, %c0_8, %c0_9] : memref<3x16x16xbf16, #tpu.memory_space<vmem>>, vector<1x16x16xbf16>
    %10 = vector.shape_cast %9 : vector<1x16x16xbf16> to vector<16x16xbf16>
    %11 = vector.extract_strided_slice %4 {offsets = [0, 1], sizes = [16, 128], strides = [1, 1]} : vector<16x256xbf16> to vector<16x128xbf16>
    %cst_10 = arith.constant dense<0.000000e+00> : vector<16x128xf32>
    %12 = tpu.matmul %10, %11, %cst_10 {dimension_numbers = #tpu.dot_dimension_numbers<[1], [0], [0], [1], [0, 0, 1, 1], [], []>} : vector<16x16xbf16>, vector<16x128xbf16>, vector<16x128xf32> -> vector<16x128xf32>
    %13 = arith.addf %8, %12 : vector<16x128xf32>
    %c2 = arith.constant 2 : index
    %c0_11 = arith.constant 0 : index
    %c0_12 = arith.constant 0 : index
    %14 = vector.load %arg4[%c2, %c0_11, %c0_12] : memref<3x16x16xbf16, #tpu.memory_space<vmem>>, vector<1x16x16xbf16>
    %15 = vector.shape_cast %14 : vector<1x16x16xbf16> to vector<16x16xbf16>
    %16 = vector.extract_strided_slice %4 {offsets = [0, 2], sizes = [16, 128], strides = [1, 1]} : vector<16x256xbf16> to vector<16x128xbf16>
    %cst_13 = arith.constant dense<0.000000e+00> : vector<16x128xf32>
    %17 = tpu.matmul %15, %16, %cst_13 {dimension_numbers = #tpu.dot_dimension_numbers<[1], [0], [0], [1], [0, 0, 1, 1], [], []>} : vector<16x16xbf16>, vector<16x128xbf16>, vector<16x128xf32> -> vector<16x128xf32>
    %18 = arith.addf %13, %17 : vector<16x128xf32>
    %19 = arith.truncf %18 : vector<16x128xf32> to vector<16x128xbf16>
    %c0_14 = arith.constant 0 : index
    %c0_15 = arith.constant 0 : index
    %c0_16 = arith.constant 0 : index
    %20 = vector.load %arg5[%c0_14, %c0_15, %c0_16] : memref<1x16x128xbf16, #tpu.memory_space<vmem>>, vector<1x16x128xbf16>
    %21 = vector.shape_cast %20 : vector<1x16x128xbf16> to vector<16x128xbf16>
    %22 = vector.shape_cast %19 : vector<16x128xbf16> to vector<1x16x128xbf16>
    tpu.vector_store %arg5[%c0_14, %c0_15, %c0_16], %22 {strides = array<i32>} : memref<1x16x128xbf16, #tpu.memory_space<vmem>>, vector<1x16x128xbf16>,
    %c0_i32 = arith.constant 0 : i32
    %23 = arith.cmpi slt, %arg1, %c0_i32 : i32
    %24 = arith.extui %23 : i1 to i32
    %c0_i32_17 = arith.constant 0 : i32
    %25 = arith.cmpi ne, %24, %c0_i32_17 : i32
    scf.if %25 {
      %cst_20 = arith.constant dense<0.000000e+00> : vector<16xf32>
      %29 = vector.multi_reduction <add>, %18, %cst_20 [1] : vector<16x128xf32> to vector<16xf32>
      %30 = vector.shape_cast %29 : vector<16xf32> to vector<16x1xf32>
      %31 = arith.mulf %18, %18 : vector<16x128xf32>
      %cst_21 = arith.constant dense<0.000000e+00> : vector<16xf32>
      %32 = vector.multi_reduction <add>, %31, %cst_21 [1] : vector<16x128xf32> to vector<16xf32>
      %33 = vector.shape_cast %32 : vector<16xf32> to vector<16x1xf32>
      %34 = tpu.concatenate %30, %33 in 1 : vector<16x1xf32>, vector<16x1xf32> -> vector<16x2xf32>
      %c0_22 = arith.constant 0 : index
      %c0_23 = arith.constant 0 : index
      %c0_24 = arith.constant 0 : index
      %c0_25 = arith.constant 0 : index
      %35 = vector.load %arg6[%c0_22, %c0_23, %c0_24, %c0_25] : memref<1x1x16x2xf32, #tpu.memory_space<vmem>>, vector<1x1x16x2xf32>
      %36 = vector.shape_cast %35 : vector<1x1x16x2xf32> to vector<16x2xf32>
      %37 = vector.shape_cast %34 : vector<16x2xf32> to vector<1x1x16x2xf32>
      tpu.vector_store %arg6[%c0_22, %c0_23, %c0_24, %c0_25], %37 {strides = array<i32>} : memref<1x1x16x2xf32, #tpu.memory_space<vmem>>, vector<1x1x16x2xf32>,
    } else {
    }
    %c0_i32_18 = arith.constant 0 : i32
    %26 = arith.cmpi eq, %arg1, %c0_i32_18 : i32
    %27 = arith.extui %26 : i1 to i32
    %c0_i32_19 = arith.constant 0 : i32
    %28 = arith.cmpi ne, %27, %c0_i32_19 : i32
    scf.if %28 {
      %29 = tpu.iota {dimensions = array<i32: 1>} : vector<16x128xi32>
      %c14_i32 = arith.constant 14 : i32
      %30 = vector.broadcast %c14_i32 : i32 to vector<16x128xi32>
      %31 = arith.cmpi slt, %29, %30 : vector<16x128xi32>
      %cst_20 = arith.constant 0.000000e+00 : f32
      %32 = vector.broadcast %cst_20 : f32 to vector<16x128xf32>
      %33 = arith.select %31, %18, %32 : vector<16x128xi1>, vector<16x128xf32>
      %cst_21 = arith.constant dense<0.000000e+00> : vector<16xf32>
      %34 = vector.multi_reduction <add>, %33, %cst_21 [1] : vector<16x128xf32> to vector<16xf32>
      %35 = vector.shape_cast %34 : vector<16xf32> to vector<16x1xf32>
      %36 = arith.mulf %33, %33 : vector<16x128xf32>
      %cst_22 = arith.constant dense<0.000000e+00> : vector<16xf32>
      %37 = vector.multi_reduction <add>, %36, %cst_22 [1] : vector<16x128xf32> to vector<16xf32>
      %38 = vector.shape_cast %37 : vector<16xf32> to vector<16x1xf32>
      %39 = tpu.concatenate %35, %38 in 1 : vector<16x1xf32>, vector<16x1xf32> -> vector<16x2xf32>
      %c0_23 = arith.constant 0 : index
      %c0_24 = arith.constant 0 : index
      %c0_25 = arith.constant 0 : index
      %c0_26 = arith.constant 0 : index
      %40 = vector.load %arg6[%c0_23, %c0_24, %c0_25, %c0_26] : memref<1x1x16x2xf32, #tpu.memory_space<vmem>>, vector<1x1x16x2xf32>
      %41 = vector.shape_cast %40 : vector<1x1x16x2xf32> to vector<16x2xf32>
      %42 = vector.shape_cast %39 : vector<16x2xf32> to vector<1x1x16x2xf32>
      tpu.vector_store %arg6[%c0_23, %c0_24, %c0_25, %c0_26], %42 {strides = array<i32>} : memref<1x1x16x2xf32, #tpu.memory_space<vmem>>, vector<1x1x16x2xf32>,
    } else {
    }
    return
  }
  func.func @transform_0(%arg0: i32, %arg1: i32) -> (i32, i32, i32) {
    %c0_i32 = arith.constant 0 : i32
    %c0_i32_0 = arith.constant 0 : i32
    return %arg0, %c0_i32, %arg1 : i32, i32, i32
  }
  func.func @transform_1(%arg0: i32, %arg1: i32) -> (i32, i32, i32) {
    %c1_i32 = arith.constant 1 : i32
    %0 = arith.addi %arg1, %c1_i32 : i32
    %c1_i32_0 = arith.constant 1 : i32
    %1 = arith.muli %0, %c1_i32_0 : i32
    %c0_i32 = arith.constant 0 : i32
    %c0_i32_1 = arith.constant 0 : i32
    return %arg0, %c0_i32, %1 : i32, i32, i32
  }
  func.func @transform_2(%arg0: i32, %arg1: i32) -> (i32, i32, i32) {
    %c0_i32 = arith.constant 0 : i32
    %c0_i32_0 = arith.constant 0 : i32
    %c0_i32_1 = arith.constant 0 : i32
    %c0_i32_2 = arith.constant 0 : i32
    return %c0_i32, %c0_i32_0, %c0_i32_1 : i32, i32, i32
  }
  func.func @transform_3(%arg0: i32, %arg1: i32) -> (i32, i32, i32) {
    %c0_i32 = arith.constant 0 : i32
    %c0_i32_0 = arith.constant 0 : i32
    return %arg0, %c0_i32, %arg1 : i32, i32, i32
  }
  func.func @transform_4(%arg0: i32, %arg1: i32) -> (i32, i32, i32, i32) {
    %c0_i32 = arith.constant 0 : i32
    %c0_i32_0 = arith.constant 0 : i32
    %c0_i32_1 = arith.constant 0 : i32
    return %arg0, %arg1, %c0_i32, %c0_i32_0 : i32, i32, i32, i32
  }
}

module attributes {stable_mosaic.version = 11 : i64} {
  func.func @_bn_relu_kernel(%arg0: i32, %arg1: memref<1x16x128xbf16, #tpu.memory_space<vmem>>, %arg2: memref<16x1xf32, #tpu.memory_space<vmem>>, %arg3: memref<16x1xf32, #tpu.memory_space<vmem>>, %arg4: memref<1x8x14xf32, #tpu.memory_space<vmem>>) attributes {dimension_semantics = [#tpu.dimension_semantics<parallel>], iteration_bounds = array<i64: 2>, scalar_prefetch = 0 : i64, scratch_operands = 0 : i64, tpu.core_type = #tpu.core_type<tc>, window_params = [{transform_indices = @transform_0, window_bounds = array<i64: 1, 16, 128>}, {pipeline_mode = #tpu.pipeline_mode<synchronous>, transform_indices = @transform_1, window_bounds = array<i64: 16, 1>}, {pipeline_mode = #tpu.pipeline_mode<synchronous>, transform_indices = @transform_2, window_bounds = array<i64: 16, 1>}, {transform_indices = @transform_3, window_bounds = array<i64: 1, 8, 14>}]} {
    %c0 = arith.constant 0 : index
    %c0_0 = arith.constant 0 : index
    %c0_1 = arith.constant 0 : index
    %0 = vector.load %arg1[%c0, %c0_0, %c0_1] : memref<1x16x128xbf16, #tpu.memory_space<vmem>>, vector<1x16x128xbf16>
    %1 = vector.shape_cast %0 : vector<1x16x128xbf16> to vector<16x128xbf16>
    %2 = vector.extract_strided_slice %1 {offsets = [0, 0], sizes = [8, 14], strides = [1, 1]} : vector<16x128xbf16> to vector<8x14xbf16>
    %3 = arith.extf %2 : vector<8x14xbf16> to vector<8x14xf32>
    %c0_2 = arith.constant 0 : index
    %c0_3 = arith.constant 0 : index
    %4 = vector.load %arg2[%c0_2, %c0_3] : memref<16x1xf32, #tpu.memory_space<vmem>>, vector<16x1xf32>
    %5 = vector.extract_strided_slice %4 {offsets = [0, 0], sizes = [8, 1], strides = [1, 1]} : vector<16x1xf32> to vector<8x1xf32>
    %c0_4 = arith.constant 0 : index
    %c0_5 = arith.constant 0 : index
    %6 = vector.load %arg3[%c0_4, %c0_5] : memref<16x1xf32, #tpu.memory_space<vmem>>, vector<16x1xf32>
    %7 = vector.extract_strided_slice %6 {offsets = [0, 0], sizes = [8, 1], strides = [1, 1]} : vector<16x1xf32> to vector<8x1xf32>
    %8 = vector.broadcast %5 : vector<8x1xf32> to vector<8x14xf32>
    %9 = arith.mulf %3, %8 : vector<8x14xf32>
    %10 = vector.broadcast %7 : vector<8x1xf32> to vector<8x14xf32>
    %11 = arith.addf %9, %10 : vector<8x14xf32>
    %cst = arith.constant 0.000000e+00 : f32
    %12 = vector.broadcast %cst : f32 to vector<8x14xf32>
    %13 = arith.maximumf %11, %12 : vector<8x14xf32>
    %c0_6 = arith.constant 0 : index
    %c0_7 = arith.constant 0 : index
    %c0_8 = arith.constant 0 : index
    %14 = vector.load %arg4[%c0_6, %c0_7, %c0_8] : memref<1x8x14xf32, #tpu.memory_space<vmem>>, vector<1x8x14xf32>
    %15 = vector.shape_cast %14 : vector<1x8x14xf32> to vector<8x14xf32>
    %16 = vector.shape_cast %13 : vector<8x14xf32> to vector<1x8x14xf32>
    tpu.vector_store %arg4[%c0_6, %c0_7, %c0_8], %16 {strides = array<i32>} : memref<1x8x14xf32, #tpu.memory_space<vmem>>, vector<1x8x14xf32>,
    return
  }
  func.func @transform_0(%arg0: i32) -> (i32, i32, i32) {
    %c0_i32 = arith.constant 0 : i32
    %c0_i32_0 = arith.constant 0 : i32
    %c0_i32_1 = arith.constant 0 : i32
    return %arg0, %c0_i32, %c0_i32_0 : i32, i32, i32
  }
  func.func @transform_1(%arg0: i32) -> (i32, i32) {
    %c0_i32 = arith.constant 0 : i32
    %c0_i32_0 = arith.constant 0 : i32
    %c0_i32_1 = arith.constant 0 : i32
    return %c0_i32, %c0_i32_0 : i32, i32
  }
  func.func @transform_2(%arg0: i32) -> (i32, i32) {
    %c0_i32 = arith.constant 0 : i32
    %c0_i32_0 = arith.constant 0 : i32
    %c0_i32_1 = arith.constant 0 : i32
    return %c0_i32, %c0_i32_0 : i32, i32
  }
  func.func @transform_3(%arg0: i32) -> (i32, i32, i32) {
    %c0_i32 = arith.constant 0 : i32
    %c0_i32_0 = arith.constant 0 : i32
    %c0_i32_1 = arith.constant 0 : i32
    return %arg0, %c0_i32, %c0_i32_0 : i32, i32, i32
  }
}

</mosaic_0001>

<llo_original>
// kernel: basic_conv1d.3
$region0: #{basic_conv1d.3}
  #allocation0 [shape = 'u32[]', space=smem, size = 0x4, offset = 0x4, fixed_abs, tag = 'smem constant byte address 0x4 - core index']
  #allocation1 [shape = 'u32[144,128]{1,0:T(1,128)}', space=vmem, size = 0x12000, scoped, tag = 'internal scratch']
  %s0 = inlined_call_operand.vmem [shape: bf16[2,16,128], index: 0, kind: input, shape index: {}]
  %s1 = inlined_call_operand.vmem [shape: f32[16,1], index: 1, kind: input, shape index: {}]
  %s2 = inlined_call_operand.vmem [shape: f32[16,1], index: 2, kind: input, shape index: {}]
  %s3 = inlined_call_operand.hbm [shape: f32[2,8,14], index: 3, kind: output, shape index: {}]
  %s4 = sld [smem:[#allocation0]]
  $region45: #{basic_conv1d.3} parent=0
    _
  %s6 = ssub.s32 1, %s4
  %s7 = scalar_select 0, %s6, %s4
  $region1: #{basic_conv1d.3} parent=0
    #allocation2 [shape = 'u8[8192]{0}', space=vmem, size = 0x2000, scoped, tag = 'output window, operand 0']
    #allocation3 [shape = 's32[2]{0}', space=sflag, size = 0x8, scoped, tag = 'scoped memory for basic_conv1d.3']
    %8 = vsyncpa [#allocation3], 0
    %s9 = scalar_lea.sflag [#allocation3], 1
    %10 = vsyncpa %s9, 0
    loop: start=0, step=1, limit=4
    $region2: #{basic_conv1d.3} parent=1 // loop_pre_header
      _
    $region3: #{basic_conv1d.3} parent=1 // loop_header
      %s12 = sphi 0, %s16
      %p13 = scmp.ge.s32.totalorder %s12, 4
      %s22 = sphi 0, %s24
      %s25 = sphi 0, %s22
      %s26 = sphi 0, %s25
      %s42 = sphi 0, %s26
      %s46 = sphi 0, %s46
      %s48 = sphi 0, %s46
      %s49 = sphi 0, %s48
      %s63 = sphi 0, %s49
      %s67 = sphi 0, %s67
      %s69 = sphi 0, %s67
      %s70 = sphi 0, %s69
      %s84 = sphi 0, %s70
      %s90 = sphi 0, %s92
      %s93 = sphi 0, %s90
      %s94 = sphi 0, %s93
      %s110 = sphi 0, %s94
    $region4: #{basic_conv1d.3} parent=1 // loop_header_branch
      %15 = sbr.rel (%p13) target = $region8
    $region5: #{basic_conv1d.3} parent=1 // loop_body
      %s17 = ssub.s32 %s12, 1
      %s18 = ssub.s32 %s12, 2
      %s19 = sadd.s32 %s12, 1
      %s20 = ssub.s32 %s12, %s19
      %p21 = scmp.eq.s32.totalorder %s20, 0
      %s23 = sadd.s32 %s22, 1
      %s24 = scalar_select %p21, %s22, %s23
      %p27 = pneg %p21
      %p28 = scmp.eq.s32.totalorder %s12, 1
      %p29 = por %p27, %p28
      %p30 = scmp.ne.s32.totalorder %s22, %s25
      %p31 = scmp.eq.s32.totalorder %s12, 0
      %p32 = por %p30, %p31
      %p33 = scmp.ne.s32.totalorder %s22, %s25
      %p34 = scmp.eq.s32.totalorder %s17, 1
      %p35 = por %p33, %p34
      %p36 = scmp.ne.s32.totalorder %s25, %s26
      %p37 = scmp.eq.s32.totalorder %s17, 0
      %p38 = por %p36, %p37
      %p39 = scmp.ne.s32.totalorder %s25, %s26
      %p40 = scmp.eq.s32.totalorder %s18, 1
      %p41 = por %p39, %p40
      %p43 = scmp.ne.s32.totalorder %s26, %s42
      %p44 = scmp.eq.s32.totalorder %s18, 0
      %p45 = por %p43, %p44
      %s47 = sadd.s32 %s46, 1
      %p50 = scmp.eq.s32.totalorder %s12, 1
      %p51 = scmp.ne.s32.totalorder %s46, %s48
      %p52 = scmp.eq.s32.totalorder %s12, 0
      %p53 = por %p51, %p52
      %p54 = scmp.ne.s32.totalorder %s46, %s48
      %p55 = scmp.eq.s32.totalorder %s17, 1
      %p56 = por %p54, %p55
      %p57 = scmp.ne.s32.totalorder %s48, %s49
      %p58 = scmp.eq.s32.totalorder %s17, 0
      %p59 = por %p57, %p58
      %p60 = scmp.ne.s32.totalorder %s48, %s49
      %p61 = scmp.eq.s32.totalorder %s18, 1
      %p62 = por %p60, %p61
      %p64 = scmp.ne.s32.totalorder %s49, %s63
      %p65 = scmp.eq.s32.totalorder %s18, 0
      %p66 = por %p64, %p65
      %s68 = sadd.s32 %s67, 1
      %p71 = scmp.eq.s32.totalorder %s12, 1
      %p72 = scmp.ne.s32.totalorder %s67, %s69
      %p73 = scmp.eq.s32.totalorder %s12, 0
      %p74 = por %p72, %p73
      %p75 = scmp.ne.s32.totalorder %s67, %s69
      %p76 = scmp.eq.s32.totalorder %s17, 1
      %p77 = por %p75, %p76
      %p78 = scmp.ne.s32.totalorder %s69, %s70
      %p79 = scmp.eq.s32.totalorder %s17, 0
      %p80 = por %p78, %p79
      %p81 = scmp.ne.s32.totalorder %s69, %s70
      %p82 = scmp.eq.s32.totalorder %s18, 1
      %p83 = por %p81, %p82
      %p85 = scmp.ne.s32.totalorder %s70, %s84
      %p86 = scmp.eq.s32.totalorder %s18, 0
      %p87 = por %p85, %p86
      %s88 = ssub.s32 %s12, %s19
      %p89 = scmp.eq.s32.totalorder %s88, 0
      %s91 = sadd.s32 %s90, 1
      %s92 = scalar_select %p89, %s90, %s91
      %p95 = pneg %p89
      %p96 = scmp.eq.s32.totalorder %s12, 1
      %p97 = por %p95, %p96
      %p98 = scmp.ne.s32.totalorder %s90, %s93
      %p99 = scmp.eq.s32.totalorder %s12, 0
      %p100 = por %p98, %p99
      %p101 = scmp.ne.s32.totalorder %s90, %s93
      %p102 = scmp.eq.s32.totalorder %s17, 1
      %p103 = por %p101, %p102
      %p104 = scmp.ne.s32.totalorder %s93, %s94
      %p105 = scmp.eq.s32.totalorder %s17, 0
      %p106 = por %p104, %p105
      %p107 = scmp.ne.s32.totalorder %s93, %s94
      %p108 = scmp.eq.s32.totalorder %s18, 1
      %p109 = por %p107, %p108
      %p111 = scmp.ne.s32.totalorder %s94, %s110
      %p112 = scmp.eq.s32.totalorder %s18, 0
      %p113 = por %p111, %p112
      %p114 = scmp.le.s32.totalorder 1, %s12
      %p115 = scmp.lt.s32.totalorder %s12, 3
      %p116 = pnand %p114, %p115
      %p117 = pneg %p116
      // Predicated region
      $region9: #{basic_conv1d.3} parent=5 // pred_check
        _
      $region10: #{basic_conv1d.3} parent=5 // pred_check_branch
        %119 = sbr.rel (%p116) target = $region12
      $region11: #{basic_conv1d.3} parent=5 // pred_region
        %s120 = ssub.s32 %s12, 1
        // Predicated region
        $region13: #{basic_conv1d.3} parent=11 // pred_check
          %p121 = pneg %p59
        $region14: #{basic_conv1d.3} parent=11 // pred_check_branch
          %123 = sbr.rel (%p121) target = $region16
        $region15: #{basic_conv1d.3} parent=11 // pred_region
          _
        $region16: #{basic_conv1d.3} parent=11 // pred_fallthru
          _
        // Predicated region
        $region17: #{basic_conv1d.3} parent=11 // pred_check
          %p124 = pneg %p80
        $region18: #{basic_conv1d.3} parent=11 // pred_check_branch
          %126 = sbr.rel (%p124) target = $region20
        $region19: #{basic_conv1d.3} parent=11 // pred_region
          _
        $region20: #{basic_conv1d.3} parent=11 // pred_fallthru
          _
      $region12: #{basic_conv1d.3} parent=5 // pred_fallthru
        _
      %p127 = scmp.lt.s32.totalorder %s12, 2
      // Predicated region
      $region21: #{basic_conv1d.3} parent=5 // pred_check
        %p128 = pneg %p127
      $region22: #{basic_conv1d.3} parent=5 // pred_check_branch
        %130 = sbr.rel (%p128) target = $region24
      $region23: #{basic_conv1d.3} parent=5 // pred_region
        // Predicated region
        $region25: #{basic_conv1d.3} parent=23 // pred_check
          %p131 = pneg %p32
        $region26: #{basic_conv1d.3} parent=23 // pred_check_branch
          %133 = sbr.rel (%p131) target = $region28
        $region27: #{basic_conv1d.3} parent=23 // pred_region
          %p134 = scmp.lt.s32.totalorder %s12, 1
          %s135 = scalar_select %p134, %s12, 1
          %s136 = smul.addr %s135, 2
          %s137 = smul.addr %s136, 4
          %s138 = scalar_lea.vmem %s0, %s137
        $region28: #{basic_conv1d.3} parent=23 // pred_fallthru
          _
      $region24: #{basic_conv1d.3} parent=5 // pred_fallthru
        _
      %p139 = scmp.le.s32.totalorder 1, %s12
      %p140 = scmp.lt.s32.totalorder %s12, 3
      %p141 = pnand %p139, %p140
      %p142 = pneg %p141
      // Predicated region
      $region29: #{basic_conv1d.3} parent=5 // pred_check
        _
      $region30: #{basic_conv1d.3} parent=5 // pred_check_branch
        %144 = sbr.rel (%p141) target = $region32
      $region31: #{basic_conv1d.3} parent=5 // pred_region
        %s145 = ssub.s32 %s12, 1
        %p146 = scmp.lt.s32.totalorder %s17, 1
        %s147 = scalar_select %p146, %s17, 1
        %s148 = smul.addr %s147, 2
        %s149 = smul.addr %s148, 4
        %s150 = scalar_lea.vmem %s0, %s149
        %p151 = pneg %p38
        %p152 = pneg %p35
        %p153 = pneg %p59
        %p154 = pneg %p56
        %p155 = pneg %p80
        %p156 = pneg %p77
        %p157 = pneg %p106
        %p158 = pneg %p103
        %s159 = sand.u32 %s93, 1
        %s160 = scalar_lea.sflag [#allocation3], %s159
        %s161 = sand.u32 %s93, 1
        %s162 = smul.addr %s161, 8
        %s163 = scalar_lea.vmem [#allocation2], %s162
        %p164 = scmp.lt.s32.totalorder %s17, 1
        %s165 = scalar_select %p164, %s17, 1
        %s166 = smul.addr %s165, 2
        %s167 = smul.addr %s166, 4
        %s168 = scalar_lea.vmem %s0, %s167
        %v169 = vld [vmem:[%s168] sm:$0xf]
        %v170 = vunpack.c.l.bf16 %v169
        %v171 = vld [vmem:[%s1] sm:$0xff]
        %v172 = vld [vmem:[%s2] sm:$0xff]
        %174 = vset.pattern.permute.xlu0 0
        %175 = vperm.xlu0 %174, %v171
        %v176 = vpop.permute.xlu0 %175
        %v178 = vmul.f32 %v170, %v176
        %180 = vset.pattern.permute.xlu0 0
        %181 = vperm.xlu0 %180, %v172
        %v182 = vpop.permute.xlu0 %181
        %v184 = vadd.f32 %v178, %v182
        %v185 = vmax.f32 %v184, 0.0
        %vm186 = vcmask 113664
        %187 = vst.msk [vmem:[%s163] sm:$0xff] %vm186, %v185
        %s188 = sand.u32 %s93, 1
        %s189 = scalar_lea.sflag [#allocation3], %s188
        %s190 = sand.u32 %s93, 1
        %s191 = smul.addr %s190, 8
        %s192 = scalar_lea.vmem [#allocation2], %s191
        // Predicated region
        $region33: #{basic_conv1d.3} parent=31 // pred_check
          %p193 = pneg %p103
        $region34: #{basic_conv1d.3} parent=31 // pred_check_branch
          %195 = sbr.rel (%p193) target = $region36
        $region35: #{basic_conv1d.3} parent=31 // pred_region
          %s197 = ssub.s32 128, 128
          %198 = vsyncadd %s189, %s197
          %s199 = smul.addr %s17, 128
          %s200 = scalar_lea.hbm %s3, %s199
          %s202 = sshll.u32 %s192, 4
          %s203 = int_to_ptr.vmem [resolvable:$true] %s202
          %205 = dma.vmem_to_hbm [thread:$0]  %s203, 128, %s200, %s189
        $region36: #{basic_conv1d.3} parent=31 // pred_fallthru
          _
      $region32: #{basic_conv1d.3} parent=5 // pred_fallthru
        _
      %p206 = scmp.le.s32.totalorder 2, %s12
      // Predicated region
      $region37: #{basic_conv1d.3} parent=5 // pred_check
        %p207 = pneg %p206
      $region38: #{basic_conv1d.3} parent=5 // pred_check_branch
        %209 = sbr.rel (%p207) target = $region40
      $region39: #{basic_conv1d.3} parent=5 // pred_region
        %s210 = ssub.s32 %s12, 2
        // Predicated region
        $region41: #{basic_conv1d.3} parent=39 // pred_check
          %p211 = pneg %p109
        $region42: #{basic_conv1d.3} parent=39 // pred_check_branch
          %213 = sbr.rel (%p211) target = $region44
        $region43: #{basic_conv1d.3} parent=39 // pred_region
          %s214 = sand.u32 %s94, 1
          %s215 = scalar_lea.sflag [#allocation3], %s214
          %s216 = sand.u32 %s94, 1
          %s217 = smul.addr %s216, 8
          %s218 = scalar_lea.vmem [#allocation2], %s217
          %219 = dma.done %s215, 128
        $region44: #{basic_conv1d.3} parent=39 // pred_fallthru
          _
      $region40: #{basic_conv1d.3} parent=5 // pred_fallthru
        _
    $region6: #{basic_conv1d.3} parent=1 // loop_footer
      %s16 = sadd.s32 1, %s12
    $region7: #{basic_conv1d.3} parent=1 // loop_footer_branch
      %11 = sbr.rel target = $region3
    $region8: #{basic_conv1d.3} parent=1 // loop_exit
      _
    %220 = vsyncpa [#allocation3], 1
    %s221 = scalar_lea.sflag [#allocation3], 1
    %222 = vsyncpa %s221, 1

// kernel: basic_conv1d.2
$region0: #{basic_conv1d.2}
  #allocation0 [shape = 'u32[]', space=smem, size = 0x4, offset = 0x4, fixed_abs, tag = 'smem constant byte address 0x4 - core index']
  #allocation1 [shape = 'u32[144,128]{1,0:T(1,128)}', space=vmem, size = 0x12000, scoped, tag = 'internal scratch']
  %s0 = inlined_call_operand.vmem [shape: bf16[2,16,256], index: 0, kind: input, shape index: {}, may-alias: {0,1}]
  %s1 = inlined_call_operand.vmem [shape: bf16[2,16,256], index: 1, kind: input, shape index: {}, may-alias: {0,1}]
  %s2 = inlined_call_operand.vmem [shape: bf16[3,16,16], index: 2, kind: input, shape index: {}]
  %s3 = inlined_call_operand.vmem [shape: bf16[2,16,128], index: 3, kind: output, shape index: {0}]
  %s4 = inlined_call_operand.vmem [shape: f32[2,1,16,2], index: 4, kind: output, shape index: {1}]
  %5 = xla_tuple %s3, %s4
  %s6 = sld [smem:[#allocation0]]
  $region143: #{basic_conv1d.2} parent=0
    _
  %s8 = ssub.s32 1, %s6
  %s9 = scalar_select 0, %s8, %s6
  $region1: #{basic_conv1d.2} parent=0
    #allocation2 [shape = 'u8[8192]{0}', space=vmem, size = 0x2000, scoped, tag = 'input window, operand 0']
    #allocation3 [shape = 'u8[8192]{0}', space=vmem, size = 0x2000, scoped, tag = 'input window, operand 1']
    loop: start=0, step=1, limit=4
    $region2: #{basic_conv1d.2} parent=1 // loop_pre_header
      _
    $region3: #{basic_conv1d.2} parent=1 // loop_header
      %s11 = sphi 0, %s15
      %p12 = scmp.ge.s32.totalorder %s11, 4
      %s18 = sphi 0, %s30
      %s19 = sphi 0, %s26
      %s20 = sphi 0, %s18
      %s21 = sphi 0, %s19
      %s22 = sphi 0, %s20
      %s23 = sphi 0, %s21
      %s35 = sphi 0, %s37
      %s38 = sphi 0, %s35
      %s39 = sphi 0, %s38
      %s55 = sphi 0, %s39
      %s65 = sphi 0, %s67
      %s68 = sphi 0, %s65
      %s69 = sphi 0, %s68
      %s85 = sphi 0, %s69
      %s89 = sphi 0, %s89
      %s91 = sphi 0, %s89
      %s92 = sphi 0, %s91
      %s106 = sphi 0, %s92
      %s114 = sphi 0, %s116
      %s117 = sphi 0, %s114
      %s118 = sphi 0, %s117
      %s134 = sphi 0, %s118
      %s142 = sphi 0, %s144
      %s145 = sphi 0, %s142
      %s146 = sphi 0, %s145
      %s162 = sphi 0, %s146
    $region4: #{basic_conv1d.2} parent=1 // loop_header_branch
      %14 = sbr.rel (%p12) target = $region8
    $region5: #{basic_conv1d.2} parent=1 // loop_body
      %s16 = ssub.s32 %s11, 1
      %s17 = ssub.s32 %s11, 2
      %s24 = sadd.s32 1, %s19
      %p25 = scmp.ge.s32.totalorder %s24, 1
      %s26 = scalar_select %p25, 0, %s24
      %s27 = sadd.s32 1, %s18
      %s28 = scalar_select %p25, %s27, %s18
      %p29 = scmp.ge.s32.totalorder %s28, 2
      %s30 = scalar_select %p29, 0, %s28
      %s31 = ssub.s32 %s18, %s30
      %s32 = ssub.s32 %s19, %s26
      %s33 = sor.u32 %s31, %s32
      %p34 = scmp.eq.s32.totalorder %s33, 0
      %s36 = sadd.s32 %s35, 1
      %s37 = scalar_select %p34, %s35, %s36
      %p40 = pneg %p34
      %p41 = scmp.eq.s32.totalorder %s11, 1
      %p42 = por %p40, %p41
      %p43 = scmp.ne.s32.totalorder %s35, %s38
      %p44 = scmp.eq.s32.totalorder %s11, 0
      %p45 = por %p43, %p44
      %p46 = scmp.ne.s32.totalorder %s35, %s38
      %p47 = scmp.eq.s32.totalorder %s16, 1
      %p48 = por %p46, %p47
      %p49 = scmp.ne.s32.totalorder %s38, %s39
      %p50 = scmp.eq.s32.totalorder %s16, 0
      %p51 = por %p49, %p50
      %p52 = scmp.ne.s32.totalorder %s38, %s39
      %p53 = scmp.eq.s32.totalorder %s17, 1
      %p54 = por %p52, %p53
      %p56 = scmp.ne.s32.totalorder %s39, %s55
      %p57 = scmp.eq.s32.totalorder %s17, 0
      %p58 = por %p56, %p57
      %s59 = sadd.s32 %s19, 1
      %s60 = sadd.s32 %s26, 1
      %s61 = ssub.s32 %s18, %s30
      %s62 = ssub.s32 %s59, %s60
      %s63 = sor.u32 %s61, %s62
      %p64 = scmp.eq.s32.totalorder %s63, 0
      %s66 = sadd.s32 %s65, 1
      %s67 = scalar_select %p64, %s65, %s66
      %p70 = pneg %p64
      %p71 = scmp.eq.s32.totalorder %s11, 1
      %p72 = por %p70, %p71
      %p73 = scmp.ne.s32.totalorder %s65, %s68
      %p74 = scmp.eq.s32.totalorder %s11, 0
      %p75 = por %p73, %p74
      %p76 = scmp.ne.s32.totalorder %s65, %s68
      %p77 = scmp.eq.s32.totalorder %s16, 1
      %p78 = por %p76, %p77
      %p79 = scmp.ne.s32.totalorder %s68, %s69
      %p80 = scmp.eq.s32.totalorder %s16, 0
      %p81 = por %p79, %p80
      %p82 = scmp.ne.s32.totalorder %s68, %s69
      %p83 = scmp.eq.s32.totalorder %s17, 1
      %p84 = por %p82, %p83
      %p86 = scmp.ne.s32.totalorder %s69, %s85
      %p87 = scmp.eq.s32.totalorder %s17, 0
      %p88 = por %p86, %p87
      %s90 = sadd.s32 %s89, 1
      %p93 = scmp.eq.s32.totalorder %s11, 1
      %p94 = scmp.ne.s32.totalorder %s89, %s91
      %p95 = scmp.eq.s32.totalorder %s11, 0
      %p96 = por %p94, %p95
      %p97 = scmp.ne.s32.totalorder %s89, %s91
      %p98 = scmp.eq.s32.totalorder %s16, 1
      %p99 = por %p97, %p98
      %p100 = scmp.ne.s32.totalorder %s91, %s92
      %p101 = scmp.eq.s32.totalorder %s16, 0
      %p102 = por %p100, %p101
      %p103 = scmp.ne.s32.totalorder %s91, %s92
      %p104 = scmp.eq.s32.totalorder %s17, 1
      %p105 = por %p103, %p104
      %p107 = scmp.ne.s32.totalorder %s92, %s106
      %p108 = scmp.eq.s32.totalorder %s17, 0
      %p109 = por %p107, %p108
      %s110 = ssub.s32 %s18, %s30
      %s111 = ssub.s32 %s19, %s26
      %s112 = sor.u32 %s110, %s111
      %p113 = scmp.eq.s32.totalorder %s112, 0
      %s115 = sadd.s32 %s114, 1
      %s116 = scalar_select %p113, %s114, %s115
      %p119 = pneg %p113
      %p120 = scmp.eq.s32.totalorder %s11, 1
      %p121 = por %p119, %p120
      %p122 = scmp.ne.s32.totalorder %s114, %s117
      %p123 = scmp.eq.s32.totalorder %s11, 0
      %p124 = por %p122, %p123
      %p125 = scmp.ne.s32.totalorder %s114, %s117
      %p126 = scmp.eq.s32.totalorder %s16, 1
      %p127 = por %p125, %p126
      %p128 = scmp.ne.s32.totalorder %s117, %s118
      %p129 = scmp.eq.s32.totalorder %s16, 0
      %p130 = por %p128, %p129
      %p131 = scmp.ne.s32.totalorder %s117, %s118
      %p132 = scmp.eq.s32.totalorder %s17, 1
      %p133 = por %p131, %p132
      %p135 = scmp.ne.s32.totalorder %s118, %s134
      %p136 = scmp.eq.s32.totalorder %s17, 0
      %p137 = por %p135, %p136
      %s138 = ssub.s32 %s18, %s30
      %s139 = ssub.s32 %s19, %s26
      %s140 = sor.u32 %s138, %s139
      %p141 = scmp.eq.s32.totalorder %s140, 0
      %s143 = sadd.s32 %s142, 1
      %s144 = scalar_select %p141, %s142, %s143
      %p147 = pneg %p141
      %p148 = scmp.eq.s32.totalorder %s11, 1
      %p149 = por %p147, %p148
      %p150 = scmp.ne.s32.totalorder %s142, %s145
      %p151 = scmp.eq.s32.totalorder %s11, 0
      %p152 = por %p150, %p151
      %p153 = scmp.ne.s32.totalorder %s142, %s145
      %p154 = scmp.eq.s32.totalorder %s16, 1
      %p155 = por %p153, %p154
      %p156 = scmp.ne.s32.totalorder %s145, %s146
      %p157 = scmp.eq.s32.totalorder %s16, 0
      %p158 = por %p156, %p157
      %p159 = scmp.ne.s32.totalorder %s145, %s146
      %p160 = scmp.eq.s32.totalorder %s17, 1
      %p161 = por %p159, %p160
      %p163 = scmp.ne.s32.totalorder %s146, %s162
      %p164 = scmp.eq.s32.totalorder %s17, 0
      %p165 = por %p163, %p164
      %p166 = scmp.le.s32.totalorder 1, %s11
      %p167 = scmp.lt.s32.totalorder %s11, 3
      %p168 = pnand %p166, %p167
      %p169 = pneg %p168
      // Predicated region
      $region9: #{basic_conv1d.2} parent=5 // pred_check
        _
      $region10: #{basic_conv1d.2} parent=5 // pred_check_branch
        %171 = sbr.rel (%p168) target = $region12
      $region11: #{basic_conv1d.2} parent=5 // pred_region
        %s172 = ssub.s32 %s11, 1
        // Predicated region
        $region13: #{basic_conv1d.2} parent=11 // pred_check
          %p173 = pneg %p102
        $region14: #{basic_conv1d.2} parent=11 // pred_check_branch
          %175 = sbr.rel (%p173) target = $region16
        $region15: #{basic_conv1d.2} parent=11 // pred_region
          _
        $region16: #{basic_conv1d.2} parent=11 // pred_fallthru
          _
      $region12: #{basic_conv1d.2} parent=5 // pred_fallthru
        _
      %p176 = scmp.lt.s32.totalorder %s11, 2
      // Predicated region
      $region17: #{basic_conv1d.2} parent=5 // pred_check
        %p177 = pneg %p176
      $region18: #{basic_conv1d.2} parent=5 // pred_check_branch
        %179 = sbr.rel (%p177) target = $region20
      $region19: #{basic_conv1d.2} parent=5 // pred_region
        // Predicated region
        $region21: #{basic_conv1d.2} parent=19 // pred_check
          %p180 = pneg %p45
        $region22: #{basic_conv1d.2} parent=19 // pred_check_branch
          %182 = sbr.rel (%p180) target = $region24
        $region23: #{basic_conv1d.2} parent=19 // pred_region
          %s183 = sand.u32 %s35, 1
          %s184 = sand.u32 %s35, 1
          %s185 = smul.addr %s184, 8
          %s186 = scalar_lea.vmem [#allocation2], %s185
          %s187 = smul.addr %s18, 4
          %s188 = sadd.s32 %s19, %s187
          %s189 = smul.addr %s188, 4
          %s190 = scalar_lea.vmem %s0, %s189
          // Predicated region
          $region25: #{basic_conv1d.2} parent=23 // pred_check
            _
          $region26: #{basic_conv1d.2} parent=23 // pred_check_branch
            %192 = sbr.rel (0) target = $region28
          $region27: #{basic_conv1d.2} parent=23 // pred_region
            // Predicated region
            $region29: #{basic_conv1d.2} parent=27 // pred_check
              _
            $region30: #{basic_conv1d.2} parent=27 // pred_check_branch
              %194 = sbr.rel target = $region32
            $region31: #{basic_conv1d.2} parent=27 // pred_region
              // Predicated region
              $region44: #{basic_conv1d.2} parent=31 // pred_check
                _
              $region45: #{basic_conv1d.2} parent=31 // pred_check_branch
                %211 = sbr.rel (0) target = $region47
              $region46: #{basic_conv1d.2} parent=31 // pred_region
                loop: start=0, step=1, limit=1
                $region48: #{basic_conv1d.2} parent=46 // loop_pre_header
                  _
                $region49: #{basic_conv1d.2} parent=46 // loop_header
                  %s213 = sphi 0, %s217
                  %p214 = scmp.ge.s32.totalorder %s213, 1
                  %s218 = sphi %s190, %s190
                  %s219 = sphi %s186, %s186
                $region50: #{basic_conv1d.2} parent=46 // loop_header_branch
                  %216 = sbr.rel (%p214) target = $region54
                $region51: #{basic_conv1d.2} parent=46 // loop_body
                  _
                $region52: #{basic_conv1d.2} parent=46 // loop_footer
                  %s217 = sadd.s32 1, %s213
                $region53: #{basic_conv1d.2} parent=46 // loop_footer_branch
                  %212 = sbr.rel target = $region49
                $region54: #{basic_conv1d.2} parent=46 // loop_exit
                  _
                loop: start=0, step=1, limit=1
                $region55: #{basic_conv1d.2} parent=46 // loop_pre_header
                  _
                $region56: #{basic_conv1d.2} parent=46 // loop_header
                  %s222 = sphi 0, %s226
                  %p223 = scmp.ge.s32.totalorder %s222, 1
                  %s227 = sphi %s190, %s190
                  %s228 = sphi %s186, %s186
                $region57: #{basic_conv1d.2} parent=46 // loop_header_branch
                  %225 = sbr.rel (%p223) target = $region61
                $region58: #{basic_conv1d.2} parent=46 // loop_body
                  %v229 = vld [vmem:[%s227] sm:$0xf]
                  %230 = vst [vmem:[%s228] sm:$0xf] %v229
                  %v231 = vld [vmem:[%s227 + $0x8] sm:$0xf]
                  %232 = vst [vmem:[%s228 + $0x4] sm:$0xf] %v231
                $region59: #{basic_conv1d.2} parent=46 // loop_footer
                  %s226 = sadd.s32 1, %s222
                $region60: #{basic_conv1d.2} parent=46 // loop_footer_branch
                  %221 = sbr.rel target = $region56
                $region61: #{basic_conv1d.2} parent=46 // loop_exit
                  _
              $region47: #{basic_conv1d.2} parent=31 // pred_fallthru
                _
            $region32: #{basic_conv1d.2} parent=27 // pred_fallthru
              _
            // Predicated region
            $region33: #{basic_conv1d.2} parent=27 // pred_check
              _
            $region34: #{basic_conv1d.2} parent=27 // pred_check_branch
              %196 = sbr.rel (0) target = $region36
            $region35: #{basic_conv1d.2} parent=27 // pred_region
              loop: start=0, step=1, limit=1
              $region37: #{basic_conv1d.2} parent=35 // loop_pre_header
                _
              $region38: #{basic_conv1d.2} parent=35 // loop_header
                %s199 = sphi 0, %s203
                %p200 = scmp.ge.s32.totalorder %s199, 1
                %s204 = sphi %s190, %s190
                %s205 = sphi %s186, %s186
              $region39: #{basic_conv1d.2} parent=35 // loop_header_branch
                %202 = sbr.rel (%p200) target = $region43
              $region40: #{basic_conv1d.2} parent=35 // loop_body
                %v206 = vld [vmem:[%s204] sm:$0xf]
                %207 = vst [vmem:[%s205] sm:$0xf] %v206
                %v208 = vld [vmem:[%s204 + $0x8] sm:$0xf]
                %209 = vst [vmem:[%s205 + $0x4] sm:$0xf] %v208
              $region41: #{basic_conv1d.2} parent=35 // loop_footer
                %s203 = sadd.s32 1, %s199
              $region42: #{basic_conv1d.2} parent=35 // loop_footer_branch
                %198 = sbr.rel target = $region38
              $region43: #{basic_conv1d.2} parent=35 // loop_exit
                _
            $region36: #{basic_conv1d.2} parent=27 // pred_fallthru
              _
          $region28: #{basic_conv1d.2} parent=23 // pred_fallthru
            _
          %233 = vnop
        $region24: #{basic_conv1d.2} parent=19 // pred_fallthru
          _
        // Predicated region
        $region62: #{basic_conv1d.2} parent=19 // pred_check
          %p234 = pneg %p75
        $region63: #{basic_conv1d.2} parent=19 // pred_check_branch
          %236 = sbr.rel (%p234) target = $region65
        $region64: #{basic_conv1d.2} parent=19 // pred_region
          %s237 = sand.u32 %s65, 1
          %s238 = sand.u32 %s65, 1
          %s239 = smul.addr %s238, 8
          %s240 = scalar_lea.vmem [#allocation3], %s239
          %s241 = sadd.s32 %s19, 1
          %s242 = smul.addr %s18, 4
          %s243 = sadd.s32 %s241, %s242
          %s244 = smul.addr %s243, 4
          %s245 = scalar_lea.vmem %s1, %s244
          // Predicated region
          $region66: #{basic_conv1d.2} parent=64 // pred_check
            _
          $region67: #{basic_conv1d.2} parent=64 // pred_check_branch
            %247 = sbr.rel (0) target = $region69
          $region68: #{basic_conv1d.2} parent=64 // pred_region
            // Predicated region
            $region70: #{basic_conv1d.2} parent=68 // pred_check
              _
            $region71: #{basic_conv1d.2} parent=68 // pred_check_branch
              %249 = sbr.rel target = $region73
            $region72: #{basic_conv1d.2} parent=68 // pred_region
              // Predicated region
              $region85: #{basic_conv1d.2} parent=72 // pred_check
                _
              $region86: #{basic_conv1d.2} parent=72 // pred_check_branch
                %266 = sbr.rel (0) target = $region88
              $region87: #{basic_conv1d.2} parent=72 // pred_region
                loop: start=0, step=1, limit=1
                $region89: #{basic_conv1d.2} parent=87 // loop_pre_header
                  _
                $region90: #{basic_conv1d.2} parent=87 // loop_header
                  %s268 = sphi 0, %s272
                  %p269 = scmp.ge.s32.totalorder %s268, 1
                  %s273 = sphi %s245, %s245
                  %s274 = sphi %s240, %s240
                $region91: #{basic_conv1d.2} parent=87 // loop_header_branch
                  %271 = sbr.rel (%p269) target = $region95
                $region92: #{basic_conv1d.2} parent=87 // loop_body
                  _
                $region93: #{basic_conv1d.2} parent=87 // loop_footer
                  %s272 = sadd.s32 1, %s268
                $region94: #{basic_conv1d.2} parent=87 // loop_footer_branch
                  %267 = sbr.rel target = $region90
                $region95: #{basic_conv1d.2} parent=87 // loop_exit
                  _
                loop: start=0, step=1, limit=1
                $region96: #{basic_conv1d.2} parent=87 // loop_pre_header
                  _
                $region97: #{basic_conv1d.2} parent=87 // loop_header
                  %s277 = sphi 0, %s281
                  %p278 = scmp.ge.s32.totalorder %s277, 1
                  %s282 = sphi %s245, %s245
                  %s283 = sphi %s240, %s240
                $region98: #{basic_conv1d.2} parent=87 // loop_header_branch
                  %280 = sbr.rel (%p278) target = $region102
                $region99: #{basic_conv1d.2} parent=87 // loop_body
                  %v284 = vld [vmem:[%s282] sm:$0xf]
                  %285 = vst [vmem:[%s283] sm:$0xf] %v284
                  %v286 = vld [vmem:[%s282 + $0x8] sm:$0xf]
                  %287 = vst [vmem:[%s283 + $0x4] sm:$0xf] %v286
                $region100: #{basic_conv1d.2} parent=87 // loop_footer
                  %s281 = sadd.s32 1, %s277
                $region101: #{basic_conv1d.2} parent=87 // loop_footer_branch
                  %276 = sbr.rel target = $region97
                $region102: #{basic_conv1d.2} parent=87 // loop_exit
                  _
              $region88: #{basic_conv1d.2} parent=72 // pred_fallthru
                _
            $region73: #{basic_conv1d.2} parent=68 // pred_fallthru
              _
            // Predicated region
            $region74: #{basic_conv1d.2} parent=68 // pred_check
              _
            $region75: #{basic_conv1d.2} parent=68 // pred_check_branch
              %251 = sbr.rel (0) target = $region77
            $region76: #{basic_conv1d.2} parent=68 // pred_region
              loop: start=0, step=1, limit=1
              $region78: #{basic_conv1d.2} parent=76 // loop_pre_header
                _
              $region79: #{basic_conv1d.2} parent=76 // loop_header
                %s254 = sphi 0, %s258
                %p255 = scmp.ge.s32.totalorder %s254, 1
                %s259 = sphi %s245, %s245
                %s260 = sphi %s240, %s240
              $region80: #{basic_conv1d.2} parent=76 // loop_header_branch
                %257 = sbr.rel (%p255) target = $region84
              $region81: #{basic_conv1d.2} parent=76 // loop_body
                %v261 = vld [vmem:[%s259] sm:$0xf]
                %262 = vst [vmem:[%s260] sm:$0xf] %v261
                %v263 = vld [vmem:[%s259 + $0x8] sm:$0xf]
                %264 = vst [vmem:[%s260 + $0x4] sm:$0xf] %v263
              $region82: #{basic_conv1d.2} parent=76 // loop_footer
                %s258 = sadd.s32 1, %s254
              $region83: #{basic_conv1d.2} parent=76 // loop_footer_branch
                %253 = sbr.rel target = $region79
              $region84: #{basic_conv1d.2} parent=76 // loop_exit
                _
            $region77: #{basic_conv1d.2} parent=68 // pred_fallthru
              _
          $region69: #{basic_conv1d.2} parent=64 // pred_fallthru
            _
          %288 = vnop
        $region65: #{basic_conv1d.2} parent=19 // pred_fallthru
          _
      $region20: #{basic_conv1d.2} parent=5 // pred_fallthru
        _
      %p289 = scmp.le.s32.totalorder 1, %s11
      %p290 = scmp.lt.s32.totalorder %s11, 3
      %p291 = pnand %p289, %p290
      %p292 = pneg %p291
      // Predicated region
      $region103: #{basic_conv1d.2} parent=5 // pred_check
        _
      $region104: #{basic_conv1d.2} parent=5 // pred_check_branch
        %294 = sbr.rel (%p291) target = $region106
      $region105: #{basic_conv1d.2} parent=5 // pred_region
        %s295 = ssub.s32 %s11, 1
        %s296 = sand.u32 %s38, 1
        %s297 = sand.u32 %s38, 1
        %s298 = smul.addr %s297, 8
        %s299 = scalar_lea.vmem [#allocation2], %s298
        // Predicated region
        $region107: #{basic_conv1d.2} parent=105 // pred_check
          %p300 = pneg %p51
        $region108: #{basic_conv1d.2} parent=105 // pred_check_branch
          %302 = sbr.rel (%p300) target = $region110
        $region109: #{basic_conv1d.2} parent=105 // pred_region
          _
        $region110: #{basic_conv1d.2} parent=105 // pred_fallthru
          _
        %s303 = sand.u32 %s68, 1
        %s304 = sand.u32 %s68, 1
        %s305 = smul.addr %s304, 8
        %s306 = scalar_lea.vmem [#allocation3], %s305
        // Predicated region
        $region111: #{basic_conv1d.2} parent=105 // pred_check
          %p307 = pneg %p81
        $region112: #{basic_conv1d.2} parent=105 // pred_check_branch
          %309 = sbr.rel (%p307) target = $region114
        $region113: #{basic_conv1d.2} parent=105 // pred_region
          _
        $region114: #{basic_conv1d.2} parent=105 // pred_fallthru
          _
        %s310 = sand.u32 %s38, 1
        %s311 = sand.u32 %s38, 1
        %s312 = smul.addr %s311, 8
        %s313 = scalar_lea.vmem [#allocation2], %s312
        %p314 = pneg %p51
        %p315 = pneg %p48
        %s316 = sand.u32 %s68, 1
        %s317 = sand.u32 %s68, 1
        %s318 = smul.addr %s317, 8
        %s319 = scalar_lea.vmem [#allocation3], %s318
        %p320 = pneg %p81
        %p321 = pneg %p78
        %p322 = pneg %p102
        %p323 = pneg %p99
        %p324 = pneg %p130
        %p325 = pneg %p127
        %p326 = scmp.lt.s32.totalorder %s20, 1
        %s327 = scalar_select %p326, %s20, 1
        %p328 = scmp.lt.s32.totalorder %s21, 0
        %s329 = scalar_select %p328, %s21, 0
        %s330 = smul.addr %s327, 2
        %s331 = sadd.s32 %s329, %s330
        %s332 = smul.addr %s331, 4
        %s333 = scalar_lea.vmem %s3, %s332
        %p334 = pneg %p158
        %p335 = pneg %p155
        %p336 = scmp.lt.s32.totalorder %s20, 1
        %s337 = scalar_select %p336, %s20, 1
        %p338 = scmp.lt.s32.totalorder %s21, 0
        %s339 = scalar_select %p338, %s21, 0
        %s340 = smul.addr %s339, 2
        %s341 = smul.addr %s337, 2
        %s342 = sadd.s32 %s340, %s341
        %s343 = smul.addr %s342, 8
        %s344 = scalar_lea.vmem %s4, %s343
        %s345 = sadd.s32 %s21, 1
        %p346 = scmp.lt.s32.totalorder %s20, 1
        %s347 = scalar_select %p346, %s20, 1
        %p348 = scmp.lt.s32.totalorder %s21, 0
        %s349 = scalar_select %p348, %s21, 0
        %s350 = smul.addr %s347, 2
        %s351 = sadd.s32 %s349, %s350
        %s352 = smul.addr %s351, 4
        %s353 = scalar_lea.vmem %s3, %s352
        %p354 = scmp.lt.s32.totalorder %s20, 1
        %s355 = scalar_select %p354, %s20, 1
        %p356 = scmp.lt.s32.totalorder %s21, 0
        %s357 = scalar_select %p356, %s21, 0
        %s358 = smul.addr %s357, 2
        %s359 = smul.addr %s355, 2
        %s360 = sadd.s32 %s358, %s359
        %s361 = smul.addr %s360, 8
        %s362 = scalar_lea.vmem %s4, %s361
        %v364 = vld [vmem:[%s299] sm:$0xf]
        %v365 = vld [vmem:[%s299 + $0x4] sm:$0xf]
        %v366 = vld [vmem:[%s306] sm:$0xf]
        %v367 = vld [vmem:[%s306 + $0x4] sm:$0xf]
        %v370 = vunpack.c.l.b16 %v364
        %v371 = vunpack.c.l.b16 %v365
        %v372 = vpack.c.b16 %v371, %v370
        %v376 = vunpack.c.l.b16 %v366
        %v377 = vunpack.c.l.b16 %v367
        %v378 = vpack.c.b16 %v377, %v376
        %v379 = vld [vmem:[%s2] sm:$0xf]
        %v380 = vld [vmem:[%s2 + $0x4] sm:$0xf]
        %s381 = scalar_lea.vmem %s2, 8
        %v382 = vld [vmem:[%s381] sm:$0xf]
        %v383 = vld [vmem:[%s381 + $0x4] sm:$0xf]
        %v386 = vunpack.c.l.b16 %v382
        %v387 = vunpack.c.l.b16 %v383
        %v388 = vpack.c.b16 %v387, %v386
        %389 = vrot.lane.b32.xlu0 %v372, 127
        %v390 = vpop.permute.xlu0 %389
        %391 = vrot.lane.b32.xlu0 %v378, 127
        %v392 = vpop.permute.xlu0 %391
        %vm393 = vcmask 1039360
        %v394 = vsel %vm393, %v390, %v392
        %vm396 = vcmask 130048
        %v398 = vsel %vm396, %v388, 0
        %400 = vmatprep.subr.bf16.mxu0 0
        %401 = vmatpush1.bf16.msra.mxu0 %v394
        %402 = vmatprep.subr.bf16.mxu0 0
        %403 = vmatpush1.bf16.msra.mxu0 0
        %404 = vmatprep.subr.bf16.mxu0 0
        %405 = vmatpush1.bf16.msra.mxu0 0
        %406 = vmatprep.subr.bf16.mxu0 0
        %407 = vmatpush1.bf16.msra.mxu0 0
        %408 = vmatprep.subr.bf16.mxu0 0
        %409 = vmatpush1.bf16.msra.mxu0 0
        %410 = vmatprep.subr.bf16.mxu0 0
        %411 = vmatpush1.bf16.msra.mxu0 0
        %412 = vmatprep.subr.bf16.mxu0 0
        %413 = vmatpush1.bf16.msra.mxu0 0
        %414 = vmatprep.subr.bf16.mxu0 0
        %415 = vmatpush1.bf16.msra.mxu0 0
        %416 = vmatprep.subr.bf16.mxu0 0
        %417 = vmatpush1.bf16.msra.mxu0 0
        %418 = vmatprep.subr.bf16.mxu0 0
        %419 = vmatpush1.bf16.msra.mxu0 0
        %420 = vmatprep.subr.bf16.mxu0 0
        %421 = vmatpush1.bf16.msra.mxu0 0
        %422 = vmatprep.subr.bf16.mxu0 0
        %423 = vmatpush1.bf16.msra.mxu0 0
        %424 = vmatprep.subr.bf16.mxu0 0
        %425 = vmatpush1.bf16.msra.mxu0 0
        %426 = vmatprep.subr.bf16.mxu0 0
        %427 = vmatpush1.bf16.msra.mxu0 0
        %428 = vmatprep.subr.bf16.mxu0 0
        %429 = vmatpush1.bf16.msra.mxu0 0
        %430 = vmatprep.subr.bf16.mxu0 0
        %431 = vmatpush1.bf16.msra.mxu0 0
        %432 = vmatprep.mubr.bf16.mxu0 0
        %433 = vmatmul.mubr.bf16.gmra.mrb[0].mxu0 %v398
        %v434 = vpop.f32.mrb[0].mxu0
        %v435 = vadd.f32 0.0, %v434
        %v436 = vpop.f32.mrb[0].mxu0
        %v437 = vpop.f32.mrb[0].mxu0
        %v438 = vadd.f32 0.0, %v437
        %v439 = vpop.f32.mrb[0].mxu0
        %440 = vdwg.mxu0
        %v443 = vunpack.c.l.b16 %v379
        %v444 = vunpack.c.l.b16 %v380
        %v445 = vpack.c.b16 %v444, %v443
        %v447 = vsel %vm396, %v445, 0
        %449 = vmatprep.subr.bf16.mxu0 0
        %450 = vmatpush1.bf16.msra.mxu0 %v372
        %451 = vmatprep.subr.bf16.mxu0 0
        %452 = vmatpush1.bf16.msra.mxu0 0
        %453 = vmatprep.subr.bf16.mxu0 0
        %454 = vmatpush1.bf16.msra.mxu0 0
        %455 = vmatprep.subr.bf16.mxu0 0
        %456 = vmatpush1.bf16.msra.mxu0 0
        %457 = vmatprep.subr.bf16.mxu0 0
        %458 = vmatpush1.bf16.msra.mxu0 0
        %459 = vmatprep.subr.bf16.mxu0 0
        %460 = vmatpush1.bf16.msra.mxu0 0
        %461 = vmatprep.subr.bf16.mxu0 0
        %462 = vmatpush1.bf16.msra.mxu0 0
        %463 = vmatprep.subr.bf16.mxu0 0
        %464 = vmatpush1.bf16.msra.mxu0 0
        %465 = vmatprep.subr.bf16.mxu0 0
        %466 = vmatpush1.bf16.msra.mxu0 0
        %467 = vmatprep.subr.bf16.mxu0 0
        %468 = vmatpush1.bf16.msra.mxu0 0
        %469 = vmatprep.subr.bf16.mxu0 0
        %470 = vmatpush1.bf16.msra.mxu0 0
        %471 = vmatprep.subr.bf16.mxu0 0
        %472 = vmatpush1.bf16.msra.mxu0 0
        %473 = vmatprep.subr.bf16.mxu0 0
        %474 = vmatpush1.bf16.msra.mxu0 0
        %475 = vmatprep.subr.bf16.mxu0 0
        %476 = vmatpush1.bf16.msra.mxu0 0
        %477 = vmatprep.subr.bf16.mxu0 0
        %478 = vmatpush1.bf16.msra.mxu0 0
        %479 = vmatprep.subr.bf16.mxu0 0
        %480 = vmatpush1.bf16.msra.mxu0 0
        %481 = vmatprep.mubr.bf16.mxu0 0
        %482 = vmatmul.mubr.bf16.gmra.mrb[0].mxu0 %v447
        %v483 = vpop.f32.mrb[0].mxu0
        %v484 = vadd.f32 %v435, %v483
        %v485 = vpop.f32.mrb[0].mxu0
        %v486 = vpop.f32.mrb[0].mxu0
        %v487 = vadd.f32 %v438, %v486
        %v488 = vpop.f32.mrb[0].mxu0
        %489 = vdwg.mxu0
        %s490 = scalar_lea.vmem %s2, 16
        %v491 = vld [vmem:[%s490] sm:$0xf]
        %v492 = vld [vmem:[%s490 + $0x4] sm:$0xf]
        %v495 = vunpack.c.l.b16 %v491
        %v496 = vunpack.c.l.b16 %v492
        %v497 = vpack.c.b16 %v496, %v495
        %498 = vrot.lane.b32.xlu0 %v372, 126
        %v499 = vpop.permute.xlu0 %498
        %500 = vrot.lane.b32.xlu0 %v378, 126
        %v501 = vpop.permute.xlu0 %500
        %vm502 = vcmask 1031168
        %v503 = vsel %vm502, %v499, %v501
        %v506 = vsel %vm396, %v497, 0
        %508 = vmatprep.subr.bf16.mxu0 0
        %509 = vmatpush1.bf16.msra.mxu0 %v503
        %510 = vmatprep.subr.bf16.mxu0 0
        %511 = vmatpush1.bf16.msra.mxu0 0
        %512 = vmatprep.subr.bf16.mxu0 0
        %513 = vmatpush1.bf16.msra.mxu0 0
        %514 = vmatprep.subr.bf16.mxu0 0
        %515 = vmatpush1.bf16.msra.mxu0 0
        %516 = vmatprep.subr.bf16.mxu0 0
        %517 = vmatpush1.bf16.msra.mxu0 0
        %518 = vmatprep.subr.bf16.mxu0 0
        %519 = vmatpush1.bf16.msra.mxu0 0
        %520 = vmatprep.subr.bf16.mxu0 0
        %521 = vmatpush1.bf16.msra.mxu0 0
        %522 = vmatprep.subr.bf16.mxu0 0
        %523 = vmatpush1.bf16.msra.mxu0 0
        %524 = vmatprep.subr.bf16.mxu0 0
        %525 = vmatpush1.bf16.msra.mxu0 0
        %526 = vmatprep.subr.bf16.mxu0 0
        %527 = vmatpush1.bf16.msra.mxu0 0
        %528 = vmatprep.subr.bf16.mxu0 0
        %529 = vmatpush1.bf16.msra.mxu0 0
        %530 = vmatprep.subr.bf16.mxu0 0
        %531 = vmatpush1.bf16.msra.mxu0 0
        %532 = vmatprep.subr.bf16.mxu0 0
        %533 = vmatpush1.bf16.msra.mxu0 0
        %534 = vmatprep.subr.bf16.mxu0 0
        %535 = vmatpush1.bf16.msra.mxu0 0
        %536 = vmatprep.subr.bf16.mxu0 0
        %537 = vmatpush1.bf16.msra.mxu0 0
        %538 = vmatprep.subr.bf16.mxu0 0
        %539 = vmatpush1.bf16.msra.mxu0 0
        %540 = vmatprep.mubr.bf16.mxu0 0
        %541 = vmatmul.mubr.bf16.gmra.mrb[0].mxu0 %v506
        %v542 = vpop.f32.mrb[0].mxu0
        %v543 = vadd.f32 0.0, %v542
        %v544 = vpop.f32.mrb[0].mxu0
        %v545 = vpop.f32.mrb[0].mxu0
        %v546 = vadd.f32 0.0, %v545
        %v547 = vpop.f32.mrb[0].mxu0
        %548 = vdwg.mxu0
        %v549 = vadd.f32 %v484, %v543
        %v550 = vadd.f32 %v487, %v546
        %v551 = vpack.c.bf16 %v550, %v549
        %v553 = vunpack.c.l.b16 %v551
        %v554 = vunpack.c.h.b16 %v551
        %v555 = vpack.c.b16 %v553, %v553
        %v556 = vpack.c.b16 %v554, %v554
        %559 = vst [vmem:[%s353] sm:$0xf] %v555
        %560 = vst [vmem:[%s353 + $0x4] sm:$0xf] %v556
        %p561 = scmp.lt.s32.totalorder %s21, 0
        // Predicated region
        $region115: #{basic_conv1d.2} parent=105 // pred_check
          %p562 = pneg %p561
        $region116: #{basic_conv1d.2} parent=105 // pred_check_branch
          %564 = sbr.rel (%p562) target = $region118
        $region117: #{basic_conv1d.2} parent=105 // pred_region
          %565 = vadd.xlane.f32.xlu0 %v549
          %v566 = vpop.xlane.xlu0 %565
          %567 = vadd.xlane.f32.xlu0 %v550
          %v568 = vpop.xlane.xlu0 %567
          %v569 = vmul.f32 %v549, %v549
          %v570 = vmul.f32 %v550, %v550
          %571 = vadd.xlane.f32.xlu0 %v569
          %v572 = vpop.xlane.xlu0 %571
          %573 = vadd.xlane.f32.xlu0 %v570
          %v574 = vpop.xlane.xlu0 %573
          %vm575 = vcmask 7168
          %v576 = vsel %vm575, %v566, %v572
          %v577 = vsel %vm575, %v568, %v574
          %vm578 = vcmask 15360
          %579 = vst.msk [vmem:[%s362] sm:$0xff] %vm578, %v576
          %580 = vst.msk [vmem:[%s362 + $0x8] sm:$0xff] %vm578, %v577
        $region118: #{basic_conv1d.2} parent=105 // pred_fallthru
          _
        %p581 = scmp.eq.s32.totalorder %s21, 0
        // Predicated region
        $region119: #{basic_conv1d.2} parent=105 // pred_check
          %p582 = pneg %p581
        $region120: #{basic_conv1d.2} parent=105 // pred_check_branch
          %584 = sbr.rel (%p582) target = $region122
        $region121: #{basic_conv1d.2} parent=105 // pred_region
          %v585 = vlaneseq
          %v586 = vand.u32 %v585, 127
          %vm587 = vcmp.lt.s32.totalorder %v586, 14
          %v588 = vsel %vm587, %v549, 0.0
          %v589 = vsel %vm587, %v550, 0.0
          %590 = vadd.xlane.f32.xlu0 %v588
          %v591 = vpop.xlane.xlu0 %590
          %592 = vadd.xlane.f32.xlu0 %v589
          %v593 = vpop.xlane.xlu0 %592
          %v594 = vmul.f32 %v588, %v588
          %v595 = vmul.f32 %v589, %v589
          %596 = vadd.xlane.f32.xlu0 %v594
          %v597 = vpop.xlane.xlu0 %596
          %598 = vadd.xlane.f32.xlu0 %v595
          %v599 = vpop.xlane.xlu0 %598
          %vm600 = vcmask 7168
          %v601 = vsel %vm600, %v591, %v597
          %v602 = vsel %vm600, %v593, %v599
          %vm603 = vcmask 15360
          %604 = vst.msk [vmem:[%s362] sm:$0xff] %vm603, %v601
          %605 = vst.msk [vmem:[%s362 + $0x8] sm:$0xff] %vm603, %v602
        $region122: #{basic_conv1d.2} parent=105 // pred_fallthru
          _
        %p606 = scmp.lt.s32.totalorder %s20, 1
        %s607 = scalar_select %p606, %s20, 1
        %p608 = scmp.lt.s32.totalorder %s21, 0
        %s609 = scalar_select %p608, %s21, 0
        %s610 = smul.addr %s607, 2
        %s611 = sadd.s32 %s609, %s610
        %s612 = smul.addr %s611, 4
        %s613 = scalar_lea.vmem %s3, %s612
        %p614 = scmp.lt.s32.totalorder %s20, 1
        %s615 = scalar_select %p614, %s20, 1
        %p616 = scmp.lt.s32.totalorder %s21, 0
        %s617 = scalar_select %p616, %s21, 0
        %s618 = smul.addr %s617, 2
        %s619 = smul.addr %s615, 2
        %s620 = sadd.s32 %s618, %s619
        %s621 = smul.addr %s620, 8
        %s622 = scalar_lea.vmem %s4, %s621
        // Predicated region
        $region123: #{basic_conv1d.2} parent=105 // pred_check
          %p623 = pneg %p127
        $region124: #{basic_conv1d.2} parent=105 // pred_check_branch
          %625 = sbr.rel (%p623) target = $region126
        $region125: #{basic_conv1d.2} parent=105 // pred_region
          _
        $region126: #{basic_conv1d.2} parent=105 // pred_fallthru
          _
        // Predicated region
        $region127: #{basic_conv1d.2} parent=105 // pred_check
          %p626 = pneg %p155
        $region128: #{basic_conv1d.2} parent=105 // pred_check_branch
          %628 = sbr.rel (%p626) target = $region130
        $region129: #{basic_conv1d.2} parent=105 // pred_region
          _
        $region130: #{basic_conv1d.2} parent=105 // pred_fallthru
          _
      $region106: #{basic_conv1d.2} parent=5 // pred_fallthru
        _
      %p629 = scmp.le.s32.totalorder 2, %s11
      // Predicated region
      $region131: #{basic_conv1d.2} parent=5 // pred_check
        %p630 = pneg %p629
      $region132: #{basic_conv1d.2} parent=5 // pred_check_branch
        %632 = sbr.rel (%p630) target = $region134
      $region133: #{basic_conv1d.2} parent=5 // pred_region
        %s633 = ssub.s32 %s11, 2
        // Predicated region
        $region135: #{basic_conv1d.2} parent=133 // pred_check
          %p634 = pneg %p133
        $region136: #{basic_conv1d.2} parent=133 // pred_check_branch
          %636 = sbr.rel (%p634) target = $region138
        $region137: #{basic_conv1d.2} parent=133 // pred_region
          %p637 = scmp.lt.s32.totalorder %s22, 1
          %s638 = scalar_select %p637, %s22, 1
          %p639 = scmp.lt.s32.totalorder %s23, 0
          %s640 = scalar_select %p639, %s23, 0
          %s641 = smul.addr %s638, 2
          %s642 = sadd.s32 %s640, %s641
          %s643 = smul.addr %s642, 4
          %s644 = scalar_lea.vmem %s3, %s643
        $region138: #{basic_conv1d.2} parent=133 // pred_fallthru
          _
        // Predicated region
        $region139: #{basic_conv1d.2} parent=133 // pred_check
          %p645 = pneg %p161
        $region140: #{basic_conv1d.2} parent=133 // pred_check_branch
          %647 = sbr.rel (%p645) target = $region142
        $region141: #{basic_conv1d.2} parent=133 // pred_region
          %p648 = scmp.lt.s32.totalorder %s22, 1
          %s649 = scalar_select %p648, %s22, 1
          %p650 = scmp.lt.s32.totalorder %s23, 0
          %s651 = scalar_select %p650, %s23, 0
          %s652 = smul.addr %s651, 2
          %s653 = smul.addr %s649, 2
          %s654 = sadd.s32 %s652, %s653
          %s655 = smul.addr %s654, 8
          %s656 = scalar_lea.vmem %s4, %s655
        $region142: #{basic_conv1d.2} parent=133 // pred_fallthru
          _
      $region134: #{basic_conv1d.2} parent=5 // pred_fallthru
        _
    $region6: #{basic_conv1d.2} parent=1 // loop_footer
      %s15 = sadd.s32 1, %s11
    $region7: #{basic_conv1d.2} parent=1 // loop_footer_branch
      %10 = sbr.rel target = $region3
    $region8: #{basic_conv1d.2} parent=1 // loop_exit
      _

</llo_original>
